<compile_context>
chip_gen: v6e
topology: v6e:2x2x1
jax: 0.10.0
libtpu: 0.0.40
codegen_flags: <defaults>
</compile_context>

<pallas_src>
import functools

import jax
import jax.numpy as jnp
import numpy as np
from jax.experimental import pallas as pl
from jax.experimental.pallas import tpu as pltpu


# ------------------------------ Pallas kernel --------------------------------

def _soft_dice_sums_kernel(x_ref, y_ref, out_ref, *, p):
    """Accumulate sum(sigmoid(x)*y) and sum(sigmoid(x)**p + y**p) over tiles.

    x_ref / y_ref block: (TR, TL), lane-dense, zero-padded tail.
    out_ref: (2,) float32 in SMEM — [0]=sum(probs*y), [1]=sum(probs^p + y^p).
    """
    @pl.when(pl.program_id(0) == 0)
    def _():
        out_ref[0] = 0.0
        out_ref[1] = 0.0

    probs = jax.nn.sigmoid(x_ref[...].astype(jnp.float32))
    y = y_ref[...].astype(jnp.float32)

    if p == 1:
        probs_p, y_p = probs, y
    else:
        probs_p, y_p = probs ** p, y ** p

    out_ref[0] += jnp.sum(probs * y)
    out_ref[1] += jnp.sum(probs_p + y_p)


# --------------------------------- wrapper -----------------------------------

def _as_float(a):
    # Keep bf16/f16/f32 as-is (cast in-kernel); only promote bool/int labels.
    if jnp.issubdtype(a.dtype, jnp.floating):
        return a
    return a.astype(jnp.float32)


def soft_dice_loss_v2(logits, labels, p=1, smooth=1.0):
    """Forward pass of SoftDiceLossV2. Returns a (1,) float32 array."""
    x = _as_float(logits).reshape(-1)
    y = _as_float(labels).reshape(-1)
    M = int(x.shape[0])

    LANE, SUB = 128, 8
    if M >= 256 * 512:
        TR, TL = 256, 512                      # 0.5 MiB f32 per input per block
    else:
        TL = LANE
        rows_needed = max(1, pl.cdiv(M, TL))
        TR = min(256, pl.cdiv(rows_needed, SUB) * SUB)

    tile = TR * TL
    num_tiles = pl.cdiv(M, tile)
    pad = num_tiles * tile - M
    if pad:
        # Zero-pad: padded labels contribute 0 to both sums; padded logits
        # contribute exactly pad * sigmoid(0)**p = pad * 0.5**p to the power
        # sum, which is subtracted analytically below (no in-kernel masking).
        x = jnp.pad(x, (0, pad))
        y = jnp.pad(y, (0, pad))
    x2 = x.reshape(num_tiles * TR, TL)
    y2 = y.reshape(num_tiles * TR, TL)

    sums = pl.pallas_call(
        functools.partial(_soft_dice_sums_kernel, p=p),
        out_shape=jax.ShapeDtypeStruct((2,), jnp.float32),
        grid=(num_tiles,),
        in_specs=[
            pl.BlockSpec((TR, TL), lambda t: (t, 0)),
            pl.BlockSpec((TR, TL), lambda t: (t, 0)),
        ],
        out_specs=pl.BlockSpec(memory_space=pltpu.SMEM),
        compiler_params=pltpu.CompilerParams(
            dimension_semantics=("arbitrary",)),
    )(x2, y2)

    inter_sum = sums[0]
    pow_sum = sums[1]
    if pad:
        pow_sum = pow_sum - jnp.float32(pad * (0.5 ** p))

    numer = 2.0 * inter_sum + smooth
    denor = pow_sum + smooth
    loss = 1.0 - numer / denor
    return loss.reshape(1)


# ------------------------------ pure-JAX reference ---------------------------

def soft_dice_loss_v2_reference(logits, labels, p=1, smooth=1.0):
    x = logits.reshape(1, -1).astype(jnp.float32)
    y = labels.reshape(1, -1).astype(jnp.float32)
    probs = jax.nn.sigmoid(x)
    numer = 2.0 * jnp.sum(probs * y, axis=1) + smooth
    denor = jnp.sum(probs ** p + y ** p, axis=1) + smooth
    return 1.0 - numer / denor


# ----------------------------------- main -------------------------------------

if __name__ == "__main__":
    key = jax.random.PRNGKey(0)
    k1, k2 = jax.random.split(key)

    n, c, h, w = 2, 4, 16, 16
    logits = jax.random.normal(k1, (n, c, h, w), dtype=jnp.float32)
    labels = jax.random.bernoulli(k2, 0.5, (n, c, h, w)).astype(jnp.float32)

    loss = soft_dice_loss_v2(logits, labels, p=1, smooth=1.0)
    loss = jax.block_until_ready(loss)

    ref = soft_dice_loss_v2_reference(logits, labels, p=1, smooth=1.0)
    ref = jax.block_until_ready(ref)

    assert np.all(np.isfinite(np.asarray(loss)))
    np.testing.assert_allclose(np.asarray(loss), np.asarray(ref), rtol=1e-5, atol=1e-6)

    print("KERNEL_OK")
</pallas_src>

<mosaic_0001>
module attributes {stable_mosaic.version = 11 : i64} {
  func.func @_soft_dice_sums_kernel(%arg0: i32, %arg1: memref<16x128xf32, #tpu.memory_space<vmem>>, %arg2: memref<16x128xf32, #tpu.memory_space<vmem>>, %arg3: memref<2xf32, #tpu.memory_space<smem>>) attributes {dimension_semantics = [#tpu.dimension_semantics<arbitrary>], iteration_bounds = array<i64: 1>, scalar_prefetch = 0 : i64, scratch_operands = 0 : i64, tpu.core_type = #tpu.core_type<tc>, window_params = [{transform_indices = @transform_0, window_bounds = array<i64: 16, 128>}, {transform_indices = @transform_1, window_bounds = array<i64: 16, 128>}, {transform_indices = @transform_2, window_bounds = array<i64: 2>}]} {
    %c0_i32 = arith.constant 0 : i32
    %0 = arith.cmpi eq, %arg0, %c0_i32 : i32
    %1 = arith.extui %0 : i1 to i32
    %c0_i32_0 = arith.constant 0 : i32
    %2 = arith.cmpi ne, %1, %c0_i32_0 : i32
    scf.if %2 {
      %cst_9 = arith.constant 0.000000e+00 : f32
      %c0_10 = arith.constant 0 : index
      %26 = memref.load %arg3[%c0_10] : memref<2xf32, #tpu.memory_space<smem>>
      memref.store %cst_9, %arg3[%c0_10] : memref<2xf32, #tpu.memory_space<smem>>
      %cst_11 = arith.constant 0.000000e+00 : f32
      %c1_12 = arith.constant 1 : index
      %27 = memref.load %arg3[%c1_12] : memref<2xf32, #tpu.memory_space<smem>>
      memref.store %cst_11, %arg3[%c1_12] : memref<2xf32, #tpu.memory_space<smem>>
    } else {
    }
    %c0 = arith.constant 0 : index
    %c0_1 = arith.constant 0 : index
    %3 = vector.load %arg1[%c0, %c0_1] : memref<16x128xf32, #tpu.memory_space<vmem>>, vector<16x128xf32>
    %4 = arith.negf %3 : vector<16x128xf32>
    %5 = math.exp %4 : vector<16x128xf32>
    %cst = arith.constant 1.000000e+00 : f32
    %6 = vector.broadcast %cst : f32 to vector<16x128xf32>
    %7 = arith.addf %6, %5 : vector<16x128xf32>
    %8 = arith.divf %6, %7 : vector<16x128xf32>
    %c0_2 = arith.constant 0 : index
    %c0_3 = arith.constant 0 : index
    %9 = vector.load %arg2[%c0_2, %c0_3] : memref<16x128xf32, #tpu.memory_space<vmem>>, vector<16x128xf32>
    %c0_4 = arith.constant 0 : index
    %10 = memref.load %arg3[%c0_4] : memref<2xf32, #tpu.memory_space<smem>>
    %11 = arith.mulf %8, %9 : vector<16x128xf32>
    %12 = vector.shape_cast %11 : vector<16x128xf32> to vector<1x16x128xf32>
    %cst_5 = arith.constant dense<0.000000e+00> : vector<1xf32>
    %13 = vector.multi_reduction <add>, %12, %cst_5 [1, 2] : vector<1x16x128xf32> to vector<1xf32>
    %14 = vector.shape_cast %13 : vector<1xf32> to vector<1x1x1xf32>
    %15 = vector.extract %14[0, 0, 0] : f32 from vector<1x1x1xf32>
    %16 = arith.addf %10, %15 : f32
    %c0_6 = arith.constant 0 : index
    %17 = memref.load %arg3[%c0_6] : memref<2xf32, #tpu.memory_space<smem>>
    memref.store %16, %arg3[%c0_6] : memref<2xf32, #tpu.memory_space<smem>>
    %c1 = arith.constant 1 : index
    %18 = memref.load %arg3[%c1] : memref<2xf32, #tpu.memory_space<smem>>
    %19 = arith.addf %8, %9 : vector<16x128xf32>
    %20 = vector.shape_cast %19 : vector<16x128xf32> to vector<1x16x128xf32>
    %cst_7 = arith.constant dense<0.000000e+00> : vector<1xf32>
    %21 = vector.multi_reduction <add>, %20, %cst_7 [1, 2] : vector<1x16x128xf32> to vector<1xf32>
    %22 = vector.shape_cast %21 : vector<1xf32> to vector<1x1x1xf32>
    %23 = vector.extract %22[0, 0, 0] : f32 from vector<1x1x1xf32>
    %24 = arith.addf %18, %23 : f32
    %c1_8 = arith.constant 1 : index
    %25 = memref.load %arg3[%c1_8] : memref<2xf32, #tpu.memory_space<smem>>
    memref.store %24, %arg3[%c1_8] : memref<2xf32, #tpu.memory_space<smem>>
    return
  }
  func.func @transform_0(%arg0: i32) -> (i32, i32) {
    %c0_i32 = arith.constant 0 : i32
    %c0_i32_0 = arith.constant 0 : i32
    return %arg0, %c0_i32 : i32, i32
  }
  func.func @transform_1(%arg0: i32) -> (i32, i32) {
    %c0_i32 = arith.constant 0 : i32
    %c0_i32_0 = arith.constant 0 : i32
    return %arg0, %c0_i32 : i32, i32
  }
  func.func @transform_2(%arg0: i32) -> i32 {
    %c0_i32 = arith.constant 0 : i32
    %c0_i32_0 = arith.constant 0 : i32
    return %c0_i32 : i32
  }
}

</mosaic_0001>

<llo_original>
// kernel: tpu_custom_call.1
$region0: #{tpu_custom_call.1}
  #allocation0 [shape = 'u32[]', space=smem, size = 0x4, offset = 0x4, fixed_abs, tag = 'smem constant byte address 0x4 - core index']
  #allocation1 [shape = 'u32[144,128]{1,0:T(1,128)}', space=vmem, size = 0x12000, scoped, tag = 'internal scratch']
  %s0 = inlined_call_operand.hbm [shape: f32[16,128], index: 0, kind: input, shape index: {}]
  %s1 = inlined_call_operand.hbm [shape: f32[16,128], index: 1, kind: input, shape index: {}]
  %s2 = inlined_call_operand.hbm [shape: f32[2], index: 2, kind: output, shape index: {}]
  %s3 = sld [smem:[#allocation0]]
  $region30: #{tpu_custom_call.1} parent=0
    _
  %s5 = ssub.s32 1, %s3
  %s6 = scalar_select 0, %s5, %s3
  $region1: #{tpu_custom_call.1} parent=0
    #allocation2 [shape = 'u8[8192]{0}', space=vmem, size = 0x2000, scoped, tag = 'input window, operand 0, single buffered']
    #allocation3 [shape = 's32[1]{0}', space=sflag, size = 0x4, scoped, tag = 'scoped memory for tpu_custom_call.1']
    #allocation4 [shape = 's32[1]{0}', space=sflag, size = 0x4, scoped, tag = 'scoped memory for tpu_custom_call.1']
    #allocation5 [shape = 'u8[8192]{0}', space=vmem, size = 0x2000, scoped, tag = 'input window, operand 1, single buffered']
    #allocation6 [shape = 's32[1]{0}', space=sflag, size = 0x4, scoped, tag = 'scoped memory for tpu_custom_call.1']
    #allocation7 [shape = 'u8[512]{0}', space=smem, size = 0x200, scoped, tag = 'output window, operand 0, single buffered']
    %7 = vsyncpa [#allocation3], 0
    %8 = vsyncpa [#allocation6], 0
    %9 = vsyncpa [#allocation4], 0
    // Predicated region
    $region2: #{tpu_custom_call.1} parent=1 // pred_check
      _
    $region3: #{tpu_custom_call.1} parent=1 // pred_check_branch
      %11 = sbr.rel (0) target = $region5
    $region4: #{tpu_custom_call.1} parent=1 // pred_region
      %s13 = ssub.s32 256, 256
      %14 = vsyncadd [#allocation3], %s13
      %s15 = sshll.u32 [#allocation2], 4
      %s16 = int_to_ptr.vmem [resolvable:$true] %s15
      %21 = dma.hbm_to_vmem [thread:$0]  %s0, 256, %s16, [#allocation3], 128, 128, 8
    $region5: #{tpu_custom_call.1} parent=1 // pred_fallthru
      _
    // Predicated region
    $region6: #{tpu_custom_call.1} parent=1 // pred_check
      _
    $region7: #{tpu_custom_call.1} parent=1 // pred_check_branch
      %23 = sbr.rel (0) target = $region9
    $region8: #{tpu_custom_call.1} parent=1 // pred_region
      %s25 = ssub.s32 256, 256
      %26 = vsyncadd [#allocation6], %s25
      %s27 = sshll.u32 [#allocation5], 4
      %s28 = int_to_ptr.vmem [resolvable:$true] %s27
      %33 = dma.hbm_to_vmem [thread:$0]  %s1, 256, %s28, [#allocation6], 128, 128, 8
    $region9: #{tpu_custom_call.1} parent=1 // pred_fallthru
      _
    // Predicated region
    $region10: #{tpu_custom_call.1} parent=1 // pred_check
      _
    $region11: #{tpu_custom_call.1} parent=1 // pred_check_branch
      %35 = sbr.rel (0) target = $region13
    $region12: #{tpu_custom_call.1} parent=1 // pred_region
      %36 = dma.done [#allocation3], 256
    $region13: #{tpu_custom_call.1} parent=1 // pred_fallthru
      _
    // Predicated region
    $region14: #{tpu_custom_call.1} parent=1 // pred_check
      _
    $region15: #{tpu_custom_call.1} parent=1 // pred_check_branch
      %38 = sbr.rel (0) target = $region17
    $region16: #{tpu_custom_call.1} parent=1 // pred_region
      %39 = dma.done [#allocation6], 256
    $region17: #{tpu_custom_call.1} parent=1 // pred_fallthru
      _
    %p40 = scmp.eq.s32.totalorder 0, 0
    // Predicated region
    $region18: #{tpu_custom_call.1} parent=1 // pred_check
      %p41 = pneg %p40
    $region19: #{tpu_custom_call.1} parent=1 // pred_check_branch
      %43 = sbr.rel (%p41) target = $region21
    $region20: #{tpu_custom_call.1} parent=1 // pred_region
      %s44 = scalar_lea.smem [#allocation7], 0
      %45 = sst [smem:[%s44]] 0.0
      %s46 = scalar_lea.smem [#allocation7], 1
      %47 = sst [smem:[%s46]] 0.0
    $region21: #{tpu_custom_call.1} parent=1 // pred_fallthru
      _
    %v48 = vld [vmem:[#allocation2] sm:$0xff]
    %v49 = vld [vmem:[#allocation2 + $0x8] sm:$0xff]
    %v50 = vxor.u32 %v48, 2147483648
    %v51 = vxor.u32 %v49, 2147483648
    %v52 = vmul.f32 %v50, 1.442695
    %v53 = vpow.pop %v52
    %v54 = vmul.f32 %v51, 1.442695
    %v55 = vpow.pop %v54
    %v56 = vadd.f32 %v53, 1.0
    %v57 = vadd.f32 %v55, 1.0
    %v58 = vrcp.pop %v56
    %v59 = vmul.f32 1.0, %v58
    %v60 = vrcp.pop %v57
    %v61 = vmul.f32 1.0, %v60
    %v62 = vld [vmem:[#allocation5] sm:$0xff]
    %v63 = vld [vmem:[#allocation5 + $0x8] sm:$0xff]
    %s64 = sld [smem:[#allocation7]]
    %v65 = vmul.f32 %v59, %v62
    %v66 = vmul.f32 %v61, %v63
    %v67 = vadd.f32 %v65, %v66
    %68 = vadd.xlane.f32.xlu0 %v67
    %v69 = vpop.xlane.xlu0 %68
    %v70 = vrot.slane %v69, 4
    %v71 = vadd.f32 %v69, %v70
    %v72 = vrot.slane %v71, 2
    %v73 = vadd.f32 %v71, %v72
    %v74 = vrot.slane %v73, 1
    %v75 = vadd.f32 %v73, %v74
    %s76 = vtos %v75
    %s77 = sadd.f32 %s64, %s76
    %s78 = scalar_lea.smem [#allocation7], 0
    %79 = sst [smem:[%s78]] %s77
    %s80 = sld [smem:[#allocation7 + $0x1]]
    %v81 = vadd.f32 %v59, %v62
    %v82 = vadd.f32 %v61, %v63
    %v83 = vadd.f32 %v81, %v82
    %84 = vadd.xlane.f32.xlu0 %v83
    %v85 = vpop.xlane.xlu0 %84
    %v86 = vrot.slane %v85, 4
    %v87 = vadd.f32 %v85, %v86
    %v88 = vrot.slane %v87, 2
    %v89 = vadd.f32 %v87, %v88
    %v90 = vrot.slane %v89, 1
    %v91 = vadd.f32 %v89, %v90
    %s92 = vtos %v91
    %s93 = sadd.f32 %s80, %s92
    %s94 = scalar_lea.smem [#allocation7], 1
    %95 = sst [smem:[%s94]] %s93
    // Predicated region
    $region22: #{tpu_custom_call.1} parent=1 // pred_check
      _
    $region23: #{tpu_custom_call.1} parent=1 // pred_check_branch
      %97 = sbr.rel (0) target = $region25
    $region24: #{tpu_custom_call.1} parent=1 // pred_region
      %s99 = ssub.s32 16, 16
      %100 = vsyncadd [#allocation4], %s99
      %103 = dma.smem_to_hbm [#allocation7], 16, %s2, [#allocation4]
    $region25: #{tpu_custom_call.1} parent=1 // pred_fallthru
      _
    // Predicated region
    $region26: #{tpu_custom_call.1} parent=1 // pred_check
      _
    $region27: #{tpu_custom_call.1} parent=1 // pred_check_branch
      %105 = sbr.rel (0) target = $region29
    $region28: #{tpu_custom_call.1} parent=1 // pred_region
      %106 = dma.done [#allocation4], 16
    $region29: #{tpu_custom_call.1} parent=1 // pred_fallthru
      _
    %107 = sfence
    %108 = vsyncpa [#allocation3], 1
    %109 = vsyncpa [#allocation6], 1
    %110 = vsyncpa [#allocation4], 1

</llo_original>
